<compile_context>
chip_gen: v7x
topology: tpu7x:2x2x1
jax: 0.10.0
libtpu: 0.0.40
codegen_flags: <defaults>
</compile_context>

<pallas_src>
import math

import jax
import jax.numpy as jnp
from jax.experimental import pallas as pl
from jax.experimental.pallas import tpu as pltpu


def get_sinusoid_encoding_table(n_position: int, d_hid: int) -> jnp.ndarray:
    """Deterministic parameter init, replicating the numpy/PyTorch table."""
    pos = jnp.arange(n_position, dtype=jnp.float32)[:, None]          # (P, 1)
    j = jnp.arange(d_hid)                                             # (E,)
    denom = jnp.power(10000.0, (2.0 * (j // 2).astype(jnp.float32)) / d_hid)
    angles = pos / denom[None, :]                                     # (P, E)
    table = jnp.where((j % 2) == 0, jnp.sin(angles), jnp.cos(angles))
    return table.astype(jnp.float32)


def _pos_enc_kernel(w_ref, o_ref):
    # w_ref: (1, TS*E)  lane-dense flattened slab of the table for this seq tile.
    # o_ref: (TB, TS*E) lane-dense output block covering TB batch elements.
    # Single sublane broadcast + full-lane stores; no reshapes / no masked vst.
    o_ref[...] = jnp.broadcast_to(w_ref[...], o_ref.shape)


def _seq_tile_rows(emb: int, eff_seq: int, max_slab_bytes: int = 1 << 20) -> int:
    """Rows per seq tile: multiple of 8 rows, TS*E multiple of 128 lanes,
    and slab (TS*E*4 bytes) capped so double-buffered blocks stay well inside
    v7x's 64 MiB VMEM."""
    base = 128 // math.gcd(emb, 16)           # base % 8 == 0 and (base*emb) % 128 == 0
    seq_rounded = ((eff_seq + base - 1) // base) * base
    budget_rows = max(base, (max_slab_bytes // (emb * 4)) // base * base)
    return min(budget_rows, seq_rounded)


def position_encoding_sine_table_forward(x: jnp.ndarray, weight: jnp.ndarray) -> jnp.ndarray:
    """x: (B, S, ...) -- only its shape is used.  weight: (num_positions, E) f32."""
    batch = int(x.shape[0])
    seq = int(x.shape[1])
    num_positions, emb = int(weight.shape[0]), int(weight.shape[1])

    # PyTorch's weight[:seq] silently truncates when seq > num_positions.
    eff_seq = min(seq, num_positions)

    # --- tiling choices -------------------------------------------------------
    ts = _seq_tile_rows(emb, eff_seq)                 # rows of the table per tile
    num_tiles = (eff_seq + ts - 1) // ts
    s_pad = num_tiles * ts                            # padded sequence length
    slab = ts * emb                                   # lane-dense slab width (mult of 128)

    tb = batch if batch < 8 else 8                    # batch rows packed per grid step
    b_pad = ((batch + tb - 1) // tb) * tb
    num_b_tiles = b_pad // tb

    # --- prepare the (cheap, one-time) lane-dense view of the table -----------
    w = weight[:eff_seq]
    if s_pad > eff_seq:
        w = jnp.pad(w, ((0, s_pad - eff_seq), (0, 0)))
    w_flat = w.reshape(num_tiles, slab)               # contiguous row-major reshape

    # VMEM use: 2 * (1 + TB) * slab_bytes  <= 2 * 9 * 1 MiB = 18 MiB (fits v7x).
    vmem_limit = 32 * 1024 * 1024

    out2d = pl.pallas_call(
        _pos_enc_kernel,
        out_shape=jax.ShapeDtypeStruct((b_pad, num_tiles * slab), jnp.float32),
        grid_spec=pltpu.PrefetchScalarGridSpec(
            num_scalar_prefetch=0,
            # Batch is the innermost (fastest-varying) axis: the input block
            # index is constant along it, so each table slab is DMA'd once per
            # seq tile instead of once per (seq tile, batch) step.
            grid=(num_tiles, num_b_tiles),
            in_specs=[pl.BlockSpec((1, slab), lambda s, b: (s, 0))],
            out_specs=pl.BlockSpec((tb, slab), lambda s, b: (b, s)),
        ),
        compiler_params=pltpu.CompilerParams(
            dimension_semantics=("parallel", "parallel"),
            vmem_limit_bytes=vmem_limit,
        ),
    )(w_flat)

    # Free contiguous reshape back to (B, S, E); slice off any pad rows.
    out = out2d.reshape(b_pad, s_pad, emb)
    if b_pad > batch or s_pad > eff_seq:
        out = out[:batch, :eff_seq, :]
    return out


if __name__ == "__main__":
    num_positions = 16
    embedding_dim = 32
    batch = 2
    seq = 8

    key = jax.random.PRNGKey(0)
    # x only contributes its shape (batch, seq); its feature dim is arbitrary.
    x = jax.random.normal(key, (batch, seq, embedding_dim), dtype=jnp.float32)

    weight = get_sinusoid_encoding_table(num_positions, embedding_dim)

    out = position_encoding_sine_table_forward(x, weight)
    out = jax.block_until_ready(out)

    # Reference check (pure JAX, mirrors the PyTorch forward).
    eff_seq = min(seq, num_positions)
    ref = jnp.broadcast_to(weight[:eff_seq, :][None, :, :], (batch, eff_seq, embedding_dim))
    assert out.shape == (batch, eff_seq, embedding_dim)
    assert out.dtype == jnp.float32
    assert bool(jnp.allclose(out, ref, atol=1e-6))

    print("KERNEL_OK")
</pallas_src>

<mosaic_0001>
module attributes {stable_mosaic.version = 11 : i64} {
  func.func @_pos_enc_kernel(%arg0: i32, %arg1: i32, %arg2: memref<1x256xf32, #tpu.memory_space<vmem>>, %arg3: memref<2x256xf32, #tpu.memory_space<vmem>>) attributes {dimension_semantics = [#tpu.dimension_semantics<parallel>, #tpu.dimension_semantics<parallel>], iteration_bounds = array<i64: 1, 1>, scalar_prefetch = 0 : i64, scratch_operands = 0 : i64, tpu.core_type = #tpu.core_type<tc>, window_params = [{transform_indices = @transform_0, window_bounds = array<i64: 1, 256>}, {transform_indices = @transform_1, window_bounds = array<i64: 2, 256>}]} {
    %c0 = arith.constant 0 : index
    %c0_0 = arith.constant 0 : index
    %0 = vector.load %arg2[%c0, %c0_0] : memref<1x256xf32, #tpu.memory_space<vmem>>, vector<1x256xf32>
    %1 = vector.shape_cast %0 : vector<1x256xf32> to vector<1x256xf32>
    %2 = vector.broadcast %1 : vector<1x256xf32> to vector<2x256xf32>
    %c0_1 = arith.constant 0 : index
    %c0_2 = arith.constant 0 : index
    %3 = vector.load %arg3[%c0_1, %c0_2] : memref<2x256xf32, #tpu.memory_space<vmem>>, vector<2x256xf32>
    tpu.vector_store %arg3[%c0_1, %c0_2], %2 {strides = array<i32>} : memref<2x256xf32, #tpu.memory_space<vmem>>, vector<2x256xf32>,
    return
  }
  func.func @transform_0(%arg0: i32, %arg1: i32) -> (i32, i32) {
    %c0_i32 = arith.constant 0 : i32
    %c0_i32_0 = arith.constant 0 : i32
    return %arg0, %c0_i32 : i32, i32
  }
  func.func @transform_1(%arg0: i32, %arg1: i32) -> (i32, i32) {
    %c0_i32 = arith.constant 0 : i32
    return %arg1, %arg0 : i32, i32
  }
}

</mosaic_0001>

<llo_original>
// kernel: tpu_custom_call.1
$region0: #{tpu_custom_call.1}
  #allocation0 [shape = 'u32[]', space=smem, size = 0x4, offset = 0x4, fixed_abs, tag = 'smem constant byte address 0x4 - core index']
  #allocation1 [shape = 'u32[144,128]{1,0:T(1,128)}', space=vmem, size = 0x12000, scoped, tag = 'internal scratch']
  %s0 = inlined_call_operand.hbm [shape: f32[1,256], index: 0, kind: input, shape index: {}]
  %s1 = inlined_call_operand.hbm [shape: f32[2,256], index: 1, kind: output, shape index: {}]
  %s2 = sld [smem:[#allocation0]]
  $region18: #{tpu_custom_call.1} parent=0
    _
  %s4 = ssub.s32 1, %s2
  %s5 = scalar_select 0, %s4, %s2
  $region1: #{tpu_custom_call.1} parent=0
    #allocation2 [shape = 'u8[1024]{0}', space=vmem, size = 0x400, scoped, tag = 'input window, operand 0, single buffered']
    #allocation3 [shape = 's32[1]{0}', space=sflag, size = 0x4, scoped, tag = 'scoped memory for tpu_custom_call.1']
    #allocation4 [shape = 's32[1]{0}', space=sflag, size = 0x4, scoped, tag = 'scoped memory for tpu_custom_call.1']
    #allocation5 [shape = 'u8[2048]{0}', space=vmem, size = 0x800, scoped, tag = 'output window, operand 0, single buffered']
    %6 = vsyncpa [#allocation3], 0
    %7 = vsyncpa [#allocation4], 0
    // Predicated region
    $region2: #{tpu_custom_call.1} parent=1 // pred_check
      _
    $region3: #{tpu_custom_call.1} parent=1 // pred_check_branch
      %9 = sbr.rel (0) target = $region5
    $region4: #{tpu_custom_call.1} parent=1 // pred_region
      %s11 = ssub.s32 32, 32
      %12 = vsyncadd [#allocation3], %s11
      %s14 = sshll.u32 [#allocation2], 4
      %s15 = int_to_ptr.vmem [resolvable:$true] %s14
      %17 = dma.hbm_to_vmem [thread:$0]  %s0, 32, %s15, [#allocation3]
    $region5: #{tpu_custom_call.1} parent=1 // pred_fallthru
      _
    // Predicated region
    $region6: #{tpu_custom_call.1} parent=1 // pred_check
      _
    $region7: #{tpu_custom_call.1} parent=1 // pred_check_branch
      %19 = sbr.rel (0) target = $region9
    $region8: #{tpu_custom_call.1} parent=1 // pred_region
      %20 = dma.done [#allocation3], 32
    $region9: #{tpu_custom_call.1} parent=1 // pred_fallthru
      _
    %v21 = vld [vmem:[#allocation2] sm:$0x3]
    %v23 = vlaneseq
    %v24 = vshrl.u32 %v23, 7
    %v25 = vsub.s32 0, %v24
    %v26 = vrot.slane %v21, %v25
    %v27 = vlaneseq
    %v28 = vshrl.u32 %v27, 7
    %v29 = vsub.s32 1, %v28
    %v30 = vrot.slane %v21, %v29
    %v31 = vcombine.low %v26, %v30
    %v33 = vunpack.c.l.s4 1983009808
    %v34 = vunpack.c.0.s8 %v33
    %v35 = vlaneseq
    %v36 = vshrl.u32 %v35, 7
    %v37 = vsub.s32 %v34, %v36
    %v38 = vrot.slane %v31, %v37
    %40 = vst [vmem:[#allocation5] sm:$0xf] %v38
    // Predicated region
    $region10: #{tpu_custom_call.1} parent=1 // pred_check
      _
    $region11: #{tpu_custom_call.1} parent=1 // pred_check_branch
      %42 = sbr.rel (0) target = $region13
    $region12: #{tpu_custom_call.1} parent=1 // pred_region
      %s44 = ssub.s32 64, 64
      %45 = vsyncadd [#allocation4], %s44
      %s47 = sshll.u32 [#allocation5], 4
      %s48 = int_to_ptr.vmem [resolvable:$true] %s47
      %50 = dma.vmem_to_hbm [thread:$0]  %s48, 64, %s1, [#allocation4]
    $region13: #{tpu_custom_call.1} parent=1 // pred_fallthru
      _
    // Predicated region
    $region14: #{tpu_custom_call.1} parent=1 // pred_check
      _
    $region15: #{tpu_custom_call.1} parent=1 // pred_check_branch
      %52 = sbr.rel (0) target = $region17
    $region16: #{tpu_custom_call.1} parent=1 // pred_region
      %53 = dma.done [#allocation4], 64
    $region17: #{tpu_custom_call.1} parent=1 // pred_fallthru
      _
    %54 = vsyncpa [#allocation3], 1
    %55 = vsyncpa [#allocation4], 1

</llo_original>
